<compile_context>
chip_gen: v6e
topology: v6e:2x2x1
jax: 0.10.0
libtpu: 0.0.40
codegen_flags: <defaults>
</compile_context>

<pallas_src>
import functools

import jax
import jax.numpy as jnp
from jax import lax
from jax.experimental import pallas as pl
from jax.experimental.pallas import tpu as pltpu

EPS = 1e-5  # F.layer_norm default


def _align_up(x, a):
    return ((x + a - 1) // a) * a


def _modified_ln_kernel(x_ref, w_ref, b_ref, o_ref, *, d):
    # x_ref: (tm, d) tile of rows (d may be ragged w.r.t. the 128-lane tile;
    # Mosaic handles the logical shape).  w_ref/b_ref: (1, d) f32.
    x = x_ref[...].astype(jnp.float32)
    inv_d = jnp.float32(1.0 / d)

    mean = jnp.sum(x, axis=-1, keepdims=True) * inv_d
    xc = x - mean
    var = jnp.sum(xc * xc, axis=-1, keepdims=True) * inv_d   # two-pass: robust
    inv = lax.rsqrt(var + EPS)

    o_ref[...] = (xc * inv * w_ref[...] + b_ref[...]).astype(o_ref.dtype)


def _vmem_ceiling_bytes():
    # Leave ~16 MiB headroom for compiler-internal scratch / neighboring
    # fusions; cap at 56 MiB (v5e/v6e have 128 MiB, v7x only 64 MiB -> 48 MiB).
    try:
        info = pltpu.get_tpu_info()
        cap = int(getattr(info, "vmem_capacity_bytes", 64 << 20))
    except Exception:
        cap = 64 << 20  # conservative (v7x)
    return int(min(56 << 20, max(32 << 20, cap - (16 << 20))))


def _num_tensorcores():
    # v7x has 2 TensorCores per chip; v5e/v6e have 1.  The grid axis is only
    # worth splitting when there are >= 2 cores to shard it across.
    try:
        kind = jax.devices()[0].device_kind.lower()
    except Exception:
        return 1
    return 2 if "v7" in kind else 1


def modified_ln(x, weight, bias, current_subset_dim, *, tm=None):
    """x: (..., D_sub) with D_sub == current_subset_dim (static Python int).
    weight/bias: (embed_dim,) parameters; only the first D_sub entries used."""
    d = int(current_subset_dim)
    assert x.shape[-1] == d, "last dim of x must equal current_subset_dim"
    orig_shape = x.shape

    m = 1
    for s in orig_shape[:-1]:
        m *= s

    # Unpadded row-major view; parameters sliced + upcast once.
    x2 = x.reshape(m, d)
    w2 = weight[:d].astype(jnp.float32).reshape(1, d)
    b2 = bias[:d].astype(jnp.float32).reshape(1, d)

    itemsize = jnp.dtype(x.dtype).itemsize
    pack = max(1, 32 // (8 * itemsize))   # sublane packing factor
    sublane_pack = 8 * pack               # 8 (f32), 16 (bf16), 32 (int8/fp8)
    d_pad = _align_up(d, 128)             # VMEM footprint only (lane padding)

    vmem_ceiling = _vmem_ceiling_bytes()
    num_tcs = _num_tensorcores()

    # ---- row-tile selection: tile-byte target, bounded by VMEM budget ------
    if tm is None:
        bytes_per_row = d_pad * itemsize
        target_tile_bytes = 4 << 20                                  # amortize ~0.35us/step
        tile_budget = max(1 << 20, (vmem_ceiling - (4 << 20)) // 4)  # 4x double-buffered in+out
        tm_target = pl.cdiv(target_tile_bytes, bytes_per_row)
        tm_budget = max(sublane_pack, tile_budget // bytes_per_row)
        tm = min(max(tm_target, sublane_pack), tm_budget, 8192)
    tm = _align_up(max(1, int(tm)), sublane_pack)
    tm = min(tm, _align_up(m, sublane_pack))

    # ---- megacore balancing (v7x only): step count a multiple of #TCs ------
    if num_tcs > 1 and m >= num_tcs * sublane_pack:
        steps = pl.cdiv(m, tm)
        steps = num_tcs * pl.cdiv(steps, num_tcs)
        tm = _align_up(pl.cdiv(m, steps), sublane_pack)
        tm = min(tm, _align_up(m, sublane_pack))

    grid = (pl.cdiv(m, tm),)

    # ---- scoped VMEM limit, consistent with the tile budget -----------------
    tile_bytes = tm * d_pad * itemsize
    needed = 4 * tile_bytes + 2 * d_pad * 4 + (2 << 20)
    vmem_limit = int(min(vmem_ceiling, max(32 << 20, needed)))

    # ---- cost estimate: actual traffic is 1 read + 1 write of (m, d) --------
    cost = pl.CostEstimate(
        flops=9 * m * d,
        transcendentals=m,
        bytes_accessed=2 * m * d * itemsize + 2 * d * 4,
    )

    kernel = functools.partial(_modified_ln_kernel, d=d)

    out = pl.pallas_call(
        kernel,
        out_shape=jax.ShapeDtypeStruct((m, d), x.dtype),
        grid_spec=pltpu.PrefetchScalarGridSpec(
            num_scalar_prefetch=0,
            grid=grid,
            in_specs=[
                pl.BlockSpec((tm, d), lambda i: (i, 0)),
                pl.BlockSpec((1, d), lambda i: (0, 0)),
                pl.BlockSpec((1, d), lambda i: (0, 0)),
            ],
            out_specs=pl.BlockSpec((tm, d), lambda i: (i, 0)),
        ),
        compiler_params=pltpu.CompilerParams(
            dimension_semantics=("parallel",),
            vmem_limit_bytes=vmem_limit,
        ),
        cost_estimate=cost,
    )(x2, w2, b2)

    return out.reshape(orig_shape)


def _reference_ln(x, weight, bias, d):
    xf = x.astype(jnp.float32)
    mean = jnp.mean(xf, axis=-1, keepdims=True)
    var = jnp.mean((xf - mean) ** 2, axis=-1, keepdims=True)
    y = (xf - mean) / jnp.sqrt(var + EPS)
    return (y * weight[:d].astype(jnp.float32) + bias[:d].astype(jnp.float32)).astype(x.dtype)


if __name__ == "__main__":
    key = jax.random.PRNGKey(0)
    kx1, kx2, kx3, kw, kb = jax.random.split(key, 5)

    embed_dim = 192  # module default parameter size
    B, N = 2, 8      # small batch / token counts

    # Module __init__ uses zeros; use small deterministic random values so
    # the output is non-trivial.
    weight = 1.0 + 0.1 * jax.random.normal(kw, (embed_dim,), dtype=jnp.float32)
    bias = 0.1 * jax.random.normal(kb, (embed_dim,), dtype=jnp.float32)

    # Case 1: subset dim is a multiple of 128 (lane-dense path).
    d1 = 128
    x1 = jax.random.normal(kx1, (B, N, d1), dtype=jnp.float32)
    out1 = jax.block_until_ready(modified_ln(x1, weight, bias, d1))
    ref1 = _reference_ln(x1, weight, bias, d1)
    assert out1.shape == x1.shape
    assert jnp.allclose(out1, ref1, atol=3e-5, rtol=1e-5), "mismatch vs reference (d=128)"

    # Case 2: subset dim NOT a multiple of 128 (ragged last dim, no pad/slice).
    d2 = 96
    x2 = jax.random.normal(kx2, (B, N, d2), dtype=jnp.float32)
    out2 = jax.block_until_ready(modified_ln(x2, weight, bias, d2))
    ref2 = _reference_ln(x2, weight, bias, d2)
    assert out2.shape == x2.shape
    assert jnp.allclose(out2, ref2, atol=3e-5, rtol=1e-5), "mismatch vs reference (d=96)"

    # Case 3: module-default subset dim (192 = full embed_dim, still ragged).
    d3 = 192
    x3 = jax.random.normal(kx3, (B, N, d3), dtype=jnp.float32)
    out3 = jax.block_until_ready(modified_ln(x3, weight, bias, d3))
    ref3 = _reference_ln(x3, weight, bias, d3)
    assert out3.shape == x3.shape
    assert jnp.allclose(out3, ref3, atol=3e-5, rtol=1e-5), "mismatch vs reference (d=192)"

    print("KERNEL_OK")
</pallas_src>

<mosaic_0001>
module attributes {stable_mosaic.version = 11 : i64} {
  func.func @_modified_ln_kernel(%arg0: i32, %arg1: memref<16x128xf32, #tpu.memory_space<vmem>>, %arg2: memref<1x128xf32, #tpu.memory_space<vmem>>, %arg3: memref<1x128xf32, #tpu.memory_space<vmem>>, %arg4: memref<16x128xf32, #tpu.memory_space<vmem>>) attributes {dimension_semantics = [#tpu.dimension_semantics<parallel>], iteration_bounds = array<i64: 1>, scalar_prefetch = 0 : i64, scratch_operands = 0 : i64, tpu.core_type = #tpu.core_type<tc>, window_params = [{transform_indices = @transform_0, window_bounds = array<i64: 16, 128>}, {pipeline_mode = #tpu.pipeline_mode<synchronous>, transform_indices = @transform_1, window_bounds = array<i64: 1, 128>}, {pipeline_mode = #tpu.pipeline_mode<synchronous>, transform_indices = @transform_2, window_bounds = array<i64: 1, 128>}, {transform_indices = @transform_3, window_bounds = array<i64: 16, 128>}]} {
    %c0 = arith.constant 0 : index
    %c0_0 = arith.constant 0 : index
    %0 = vector.load %arg1[%c0, %c0_0] : memref<16x128xf32, #tpu.memory_space<vmem>>, vector<16x128xf32>
    %cst = arith.constant dense<0.000000e+00> : vector<16xf32>
    %1 = vector.multi_reduction <add>, %0, %cst [1] : vector<16x128xf32> to vector<16xf32>
    %2 = vector.shape_cast %1 : vector<16xf32> to vector<16x1xf32>
    %cst_1 = arith.constant 7.812500e-03 : f32
    %3 = vector.broadcast %cst_1 : f32 to vector<16x1xf32>
    %4 = arith.mulf %2, %3 : vector<16x1xf32>
    %5 = vector.broadcast %4 : vector<16x1xf32> to vector<16x128xf32>
    %6 = arith.subf %0, %5 : vector<16x128xf32>
    %7 = arith.mulf %6, %6 : vector<16x128xf32>
    %cst_2 = arith.constant dense<0.000000e+00> : vector<16xf32>
    %8 = vector.multi_reduction <add>, %7, %cst_2 [1] : vector<16x128xf32> to vector<16xf32>
    %9 = vector.shape_cast %8 : vector<16xf32> to vector<16x1xf32>
    %cst_3 = arith.constant 7.812500e-03 : f32
    %10 = vector.broadcast %cst_3 : f32 to vector<16x1xf32>
    %11 = arith.mulf %9, %10 : vector<16x1xf32>
    %cst_4 = arith.constant 9.99999974E-6 : f32
    %12 = vector.broadcast %cst_4 : f32 to vector<16x1xf32>
    %13 = arith.addf %11, %12 : vector<16x1xf32>
    %14 = math.rsqrt %13 : vector<16x1xf32>
    %15 = vector.broadcast %14 : vector<16x1xf32> to vector<16x128xf32>
    %16 = arith.mulf %6, %15 : vector<16x128xf32>
    %c0_5 = arith.constant 0 : index
    %c0_6 = arith.constant 0 : index
    %17 = vector.load %arg2[%c0_5, %c0_6] : memref<1x128xf32, #tpu.memory_space<vmem>>, vector<1x128xf32>
    %18 = vector.broadcast %17 : vector<1x128xf32> to vector<16x128xf32>
    %19 = arith.mulf %16, %18 : vector<16x128xf32>
    %c0_7 = arith.constant 0 : index
    %c0_8 = arith.constant 0 : index
    %20 = vector.load %arg3[%c0_7, %c0_8] : memref<1x128xf32, #tpu.memory_space<vmem>>, vector<1x128xf32>
    %21 = vector.broadcast %20 : vector<1x128xf32> to vector<16x128xf32>
    %22 = arith.addf %19, %21 : vector<16x128xf32>
    %c0_9 = arith.constant 0 : index
    %c0_10 = arith.constant 0 : index
    %23 = vector.load %arg4[%c0_9, %c0_10] : memref<16x128xf32, #tpu.memory_space<vmem>>, vector<16x128xf32>
    tpu.vector_store %arg4[%c0_9, %c0_10], %22 {strides = array<i32>} : memref<16x128xf32, #tpu.memory_space<vmem>>, vector<16x128xf32>,
    return
  }
  func.func @transform_0(%arg0: i32) -> (i32, i32) {
    %c0_i32 = arith.constant 0 : i32
    %c0_i32_0 = arith.constant 0 : i32
    return %arg0, %c0_i32 : i32, i32
  }
  func.func @transform_1(%arg0: i32) -> (i32, i32) {
    %c0_i32 = arith.constant 0 : i32
    %c0_i32_0 = arith.constant 0 : i32
    %c0_i32_1 = arith.constant 0 : i32
    return %c0_i32, %c0_i32_0 : i32, i32
  }
  func.func @transform_2(%arg0: i32) -> (i32, i32) {
    %c0_i32 = arith.constant 0 : i32
    %c0_i32_0 = arith.constant 0 : i32
    %c0_i32_1 = arith.constant 0 : i32
    return %c0_i32, %c0_i32_0 : i32, i32
  }
  func.func @transform_3(%arg0: i32) -> (i32, i32) {
    %c0_i32 = arith.constant 0 : i32
    %c0_i32_0 = arith.constant 0 : i32
    return %arg0, %c0_i32 : i32, i32
  }
}

</mosaic_0001>

<llo_original>
// kernel: tpu_custom_call.1
$region0: #{tpu_custom_call.1}
  #allocation0 [shape = 'u32[]', space=smem, size = 0x4, offset = 0x4, fixed_abs, tag = 'smem constant byte address 0x4 - core index']
  #allocation1 [shape = 'u32[144,128]{1,0:T(1,128)}', space=vmem, size = 0x12000, scoped, tag = 'internal scratch']
  %s0 = inlined_call_operand.hbm [shape: f32[16,128], index: 0, kind: input, shape index: {}]
  %s1 = inlined_call_operand.vmem [shape: f32[1,128], index: 1, kind: input, shape index: {}]
  %s2 = inlined_call_operand.vmem [shape: f32[1,128], index: 2, kind: input, shape index: {}]
  %s3 = inlined_call_operand.hbm [shape: f32[16,128], index: 3, kind: output, shape index: {}]
  %s4 = sld [smem:[#allocation0]]
  $region26: #{tpu_custom_call.1} parent=0
    _
  %s6 = ssub.s32 1, %s4
  %s7 = scalar_select 0, %s6, %s4
  $region1: #{tpu_custom_call.1} parent=0
    #allocation2 [shape = 'u8[8192]{0}', space=vmem, size = 0x2000, scoped, tag = 'input window, operand 0, single buffered']
    #allocation3 [shape = 's32[1]{0}', space=sflag, size = 0x4, scoped, tag = 'scoped memory for tpu_custom_call.1']
    #allocation4 [shape = 's32[1]{0}', space=sflag, size = 0x4, scoped, tag = 'scoped memory for tpu_custom_call.1']
    #allocation5 [shape = 'u8[8192]{0}', space=vmem, size = 0x2000, scoped, tag = 'output window, operand 0, single buffered']
    %8 = vsyncpa [#allocation3], 0
    %9 = vsyncpa [#allocation4], 0
    // Predicated region
    $region2: #{tpu_custom_call.1} parent=1 // pred_check
      _
    $region3: #{tpu_custom_call.1} parent=1 // pred_check_branch
      %11 = sbr.rel (0) target = $region5
    $region4: #{tpu_custom_call.1} parent=1 // pred_region
      %s13 = ssub.s32 256, 256
      %14 = vsyncadd [#allocation3], %s13
      %s15 = sshll.u32 [#allocation2], 4
      %s16 = int_to_ptr.vmem [resolvable:$true] %s15
      %21 = dma.hbm_to_vmem [thread:$0]  %s0, 256, %s16, [#allocation3], 128, 128, 8
    $region5: #{tpu_custom_call.1} parent=1 // pred_fallthru
      _
    // Predicated region
    $region6: #{tpu_custom_call.1} parent=1 // pred_check
      _
    $region7: #{tpu_custom_call.1} parent=1 // pred_check_branch
      %23 = sbr.rel (0) target = $region9
    $region8: #{tpu_custom_call.1} parent=1 // pred_region
      _
    $region9: #{tpu_custom_call.1} parent=1 // pred_fallthru
      _
    // Predicated region
    $region10: #{tpu_custom_call.1} parent=1 // pred_check
      _
    $region11: #{tpu_custom_call.1} parent=1 // pred_check_branch
      %25 = sbr.rel (0) target = $region13
    $region12: #{tpu_custom_call.1} parent=1 // pred_region
      _
    $region13: #{tpu_custom_call.1} parent=1 // pred_fallthru
      _
    // Predicated region
    $region14: #{tpu_custom_call.1} parent=1 // pred_check
      _
    $region15: #{tpu_custom_call.1} parent=1 // pred_check_branch
      %27 = sbr.rel (0) target = $region17
    $region16: #{tpu_custom_call.1} parent=1 // pred_region
      %28 = dma.done [#allocation3], 256
    $region17: #{tpu_custom_call.1} parent=1 // pred_fallthru
      _
    %v29 = vld [vmem:[#allocation2] sm:$0xff]
    %v30 = vld [vmem:[#allocation2 + $0x8] sm:$0xff]
    %31 = vadd.xlane.f32.xlu0 %v29
    %v32 = vpop.xlane.xlu0 %31
    %33 = vadd.xlane.f32.xlu0 %v30
    %v34 = vpop.xlane.xlu0 %33
    %v35 = vmul.f32 %v32, 0.0078125
    %v36 = vmul.f32 %v34, 0.0078125
    %v37 = vsub.f32 %v29, %v35
    %v38 = vsub.f32 %v30, %v36
    %v39 = vmul.f32 %v37, %v37
    %v40 = vmul.f32 %v38, %v38
    %41 = vadd.xlane.f32.xlu0 %v39
    %v42 = vpop.xlane.xlu0 %41
    %43 = vadd.xlane.f32.xlu0 %v40
    %v44 = vpop.xlane.xlu0 %43
    %v45 = vmul.f32 %v42, 0.0078125
    %v46 = vmul.f32 %v44, 0.0078125
    %v47 = vadd.f32 %v45, 1e-05
    %v48 = vadd.f32 %v46, 1e-05
    %v49 = vrsqrt.pop %v47
    %v50 = vrsqrt.pop %v48
    %v51 = vmul.f32 %v37, %v49
    %v52 = vmul.f32 %v38, %v50
    %v53 = vld [vmem:[%s1] sm:$0x1]
    %v55 = vlaneseq
    %v56 = vshrl.u32 %v55, 7
    %v57 = vsub.s32 0, %v56
    %v58 = vrot.slane %v53, %v57
    %v60 = vmul.f32 %v51, %v58
    %v61 = vmul.f32 %v52, %v58
    %v62 = vld [vmem:[%s2] sm:$0x1]
    %v64 = vlaneseq
    %v65 = vshrl.u32 %v64, 7
    %v66 = vsub.s32 0, %v65
    %v67 = vrot.slane %v62, %v66
    %v69 = vadd.f32 %v60, %v67
    %v70 = vadd.f32 %v61, %v67
    %71 = vst [vmem:[#allocation5] sm:$0xff] %v69
    %72 = vst [vmem:[#allocation5 + $0x8] sm:$0xff] %v70
    // Predicated region
    $region18: #{tpu_custom_call.1} parent=1 // pred_check
      _
    $region19: #{tpu_custom_call.1} parent=1 // pred_check_branch
      %74 = sbr.rel (0) target = $region21
    $region20: #{tpu_custom_call.1} parent=1 // pred_region
      %s76 = ssub.s32 256, 256
      %77 = vsyncadd [#allocation4], %s76
      %s78 = sshll.u32 [#allocation5], 4
      %s79 = int_to_ptr.vmem [resolvable:$true] %s78
      %84 = dma.vmem_to_hbm [thread:$0]  %s79, 256, %s3, [#allocation4], 128, 128, 8
    $region21: #{tpu_custom_call.1} parent=1 // pred_fallthru
      _
    // Predicated region
    $region22: #{tpu_custom_call.1} parent=1 // pred_check
      _
    $region23: #{tpu_custom_call.1} parent=1 // pred_check_branch
      %86 = sbr.rel (0) target = $region25
    $region24: #{tpu_custom_call.1} parent=1 // pred_region
      %87 = dma.done [#allocation4], 256
    $region25: #{tpu_custom_call.1} parent=1 // pred_fallthru
      _
    %88 = vsyncpa [#allocation3], 1
    %89 = vsyncpa [#allocation4], 1

</llo_original>
